<compile_context>
chip_gen: v6e
topology: v6e:2x2x1
jax: 0.10.0
libtpu: 0.0.40
codegen_flags: <defaults>
</compile_context>

<pallas_src>
import functools

import jax
import jax.numpy as jnp
from jax import lax
from jax.experimental import pallas as pl
from jax.experimental.pallas import tpu as pltpu

# ----------------- configuration (mirrors the PyTorch __init__ args) --------
C_IN = 4
C_OUT = 6
HIDDEN = int(1.5 * C_IN)          # ffn hidden width = int(1.5 * C_in)
K_CONV = (1, 3)                   # k_conv
PERCEPTUALS = (1, 3)              # args.perceptuals
DILATED_KERNELS = (3, 5)          # args.dilated_kernels
DILATION = 2                      # args.dilation_rate (=> "same" spatial size)
FOLD = 2                          # batch images folded onto the sublane axis


# ----------------------------- tap bookkeeping --------------------------------
def _square_taps(k, dil):
    pad = dil * (k - 1) // 2
    return [(dil * a - pad, dil * b - pad) for a in range(k) for b in range(k)]


def _union_taps(kernels, dil):
    s = set()
    for k in kernels:
        s.update(_square_taps(k, dil))
    return sorted(s)


PERC_TAPS = _union_taps(PERCEPTUALS, 1)        # 1x1 merged into 3x3 at pack time
CONV_TAPS = _union_taps(K_CONV, 1)
DIL_TAPS = {k: _square_taps(k, DILATION) for k in DILATED_KERNELS}
DIL_UNION = sorted(set().union(*[set(v) for v in DIL_TAPS.values()]))

# ----------------------- packed-weight column layout --------------------------
# Every weight/bias is an 8-row column (channel axis on sublanes, both folded
# images covered) inside ONE (8, 128) f32 slab: column j = slab[:, j].
_PLAN = (
    [("ffn1_w1", C_IN), ("ffn1_b1", 1),
     ("ffn1_w2", FOLD * HIDDEN), ("ffn1_b2", 1),
     ("percM_w", len(PERC_TAPS)), ("percM_b", 1),
     ("convM_w", len(CONV_TAPS)), ("convM_b", 1),
     ("pw_w", FOLD * C_IN), ("pw_b", 1)]
    + sum([[(f"dil{i}_w", k * k), (f"dil{i}_b", 1)]
           for i, k in enumerate(DILATED_KERNELS)], [])
    + [("ffn2_w1", C_IN), ("ffn2_b1", 1),
       ("ffn2_w2", HIDDEN), ("ffn2_b2", 1)]
)

COL_OFF = {}
NCOL = 0
for _name, _n in _PLAN:
    COL_OFF[_name] = NCOL
    NCOL += _n
assert NCOL <= 128, NCOL


# ----------------------------- parameter init ---------------------------------
def init_params(key):
    """Deterministic synthetic weights.

    Pointwise conv weights are stored as (C_in, C_out); depthwise conv weights
    as (k*k, C) with row index a*k+b for tap (a, b); biases as (1, C)."""
    def nrm(k, shape, scale=0.25):
        return scale * jax.random.normal(k, shape, jnp.float32)

    keys = iter(jax.random.split(key, 64))
    p = {}
    p["ffn1_w1"] = nrm(next(keys), (C_IN, HIDDEN))
    p["ffn1_b1"] = nrm(next(keys), (1, HIDDEN))
    p["ffn1_w2"] = nrm(next(keys), (HIDDEN, C_IN))
    p["ffn1_b2"] = nrm(next(keys), (1, C_IN))
    for i, k in enumerate(PERCEPTUALS):
        p[f"perc{i}_w"] = nrm(next(keys), (k * k, C_IN))
        p[f"perc{i}_b"] = nrm(next(keys), (1, C_IN))
    for i, k in enumerate(K_CONV):
        p[f"conv{i}_w"] = nrm(next(keys), (k * k, C_IN))
        p[f"conv{i}_b"] = nrm(next(keys), (1, C_IN))
    p["pw_w"] = nrm(next(keys), (C_IN, C_IN))
    p["pw_b"] = nrm(next(keys), (1, C_IN))
    for i, k in enumerate(DILATED_KERNELS):
        p[f"dil{i}_w"] = nrm(next(keys), (k * k, C_IN))
        p[f"dil{i}_b"] = nrm(next(keys), (1, C_IN))
    p["ffn2_w1"] = nrm(next(keys), (C_IN, HIDDEN))
    p["ffn2_b1"] = nrm(next(keys), (1, HIDDEN))
    p["ffn2_w2"] = nrm(next(keys), (HIDDEN, C_OUT))
    p["ffn2_b2"] = nrm(next(keys), (1, C_OUT))
    return p


def pack_params(params):
    """Pack every param into the (8, 128) f32 column slab (order == _PLAN)."""
    cols = []

    def pad8(v):                               # (n<=8,) values at rows 0..n-1
        v = jnp.asarray(v, jnp.float32).reshape(-1)
        return jnp.pad(v, (0, 8 - v.shape[0]))

    def dup8(v):                               # (4,) duplicated for both images
        v = jnp.asarray(v, jnp.float32).reshape(-1)
        return jnp.concatenate([v, v])

    def imgpad(v, i):                          # (4,) at rows 4i..4i+3, else 0
        v = jnp.asarray(v, jnp.float32).reshape(-1)
        return jnp.zeros((8,), jnp.float32).at[4 * i:4 * i + 4].set(v)

    # ffn1
    for c in range(C_IN):
        cols.append(pad8(params["ffn1_w1"][c]))
    cols.append(pad8(params["ffn1_b1"][0]))
    for i in range(FOLD):
        for c in range(HIDDEN):
            cols.append(imgpad(params["ffn1_w2"][c], i))
    cols.append(dup8(params["ffn1_b2"][0]))

    # merged (summed, pre-GELU) depthwise stages: perceptuals and k_conv
    def merged_dw_cols(prefix, kernels, dil, taps):
        wmap = {t: jnp.zeros((C_IN,), jnp.float32) for t in taps}
        bias = jnp.zeros((C_IN,), jnp.float32)
        for idx, k in enumerate(kernels):
            w = jnp.asarray(params[f"{prefix}{idx}_w"], jnp.float32)
            b = jnp.asarray(params[f"{prefix}{idx}_b"], jnp.float32).reshape(-1)
            pad = dil * (k - 1) // 2
            for a in range(k):
                for c in range(k):
                    t = (dil * a - pad, dil * c - pad)
                    wmap[t] = wmap[t] + w[a * k + c]
            bias = bias + b
        out = [dup8(wmap[t]) for t in taps]
        out.append(dup8(bias))
        return out

    cols += merged_dw_cols("perc", PERCEPTUALS, 1, PERC_TAPS)
    cols += merged_dw_cols("conv", K_CONV, 1, CONV_TAPS)

    # pointwise mixing conv
    for i in range(FOLD):
        for c in range(C_IN):
            cols.append(imgpad(params["pw_w"][c], i))
    cols.append(dup8(params["pw_b"][0]))

    # dilated convs (kept separate: each gets its own GELU before the sum)
    for idx, k in enumerate(DILATED_KERNELS):
        w = params[f"dil{idx}_w"]
        for t in range(k * k):
            cols.append(dup8(w[t]))
        cols.append(dup8(params[f"dil{idx}_b"][0]))

    # ffn2
    for c in range(C_IN):
        cols.append(pad8(params["ffn2_w1"][c]))
    cols.append(pad8(params["ffn2_b1"][0]))
    for c in range(HIDDEN):
        cols.append(pad8(params["ffn2_w2"][c]))
    cols.append(pad8(params["ffn2_b2"][0]))

    assert len(cols) == NCOL, (len(cols), NCOL)
    slab = jnp.stack(cols, axis=1)                         # (8, NCOL)
    return jnp.pad(slab, ((0, 0), (0, 128 - NCOL)))        # (8, 128): one vreg


# --------------------- hardware roll-direction probe --------------------------
@functools.lru_cache(maxsize=None)
def _roll_shifts_up():
    """True iff pltpu.roll matches numpy.roll (element i -> i + shift).

    Kept as a one-off on-device probe (review suggested pinning a constant;
    the probe is cached, costs one tiny compile, and is convention-proof)."""
    def probe(x_ref, o_ref):
        o_ref[...] = pltpu.roll(x_ref[...], 1, 1)

    x = jnp.tile(jnp.arange(256, dtype=jnp.float32)[None, :], (8, 1))
    y = pl.pallas_call(
        probe, out_shape=jax.ShapeDtypeStruct((8, 256), jnp.float32))(x)
    return bool(float(y[0, 0]) == 255.0)


# ------------------------------- kernel ---------------------------------------
def make_kernel(H, W, roll_up):
    HW = H * W
    all_taps = PERC_TAPS + CONV_TAPS + DIL_UNION
    need_dy = sorted({dy for dy, _ in all_taps if dy != 0})
    need_dx = sorted({dx for _, dx in all_taps if dx != 0})

    def kernel(x_ref, w_ref, o_ref):
        # x_ref: (8, HW)  [img0 ch 0..3 / img1 ch 4..7]
        # w_ref: (8, 128) packed weight columns
        # o_ref: (2, C_OUT, HW)
        wv = w_ref[...]

        def col(j, n=8):
            # static weight column -> (n, 1); broadcasts along lanes in the mul
            return wv[0:n, j:j + 1]

        def rcp(v):
            # EUP approximate reciprocal + one Newton step (v >= 1).  Dropping
            # Newton / tanh-GELU risks the 1e-3 parity with torch's erf GELU.
            r = pl.reciprocal(v, approx=True)
            return r * (2.0 - v * r)

        def gelu(v):
            # erf GELU (torch default), A&S 7.1.26; divide + exp on the EUP.
            u = v * 0.7071067811865476
            a1, a2, a3, a4, a5 = (0.254829592, -0.284496736, 1.421413741,
                                  -1.453152027, 1.061405429)
            au = jnp.abs(u)
            t = rcp(1.0 + 0.3275911 * au)
            poly = ((((a5 * t + a4) * t + a3) * t + a2) * t + a1) * t
            e = 1.0 - poly * jnp.exp(-au * au)
            erf = jnp.where(u >= 0.0, e, -e)
            return 0.5 * v * (1.0 + erf)

        # ---- shared boundary masks: ONE compare per distinct dy / dx --------
        pos = lax.broadcasted_iota(jnp.int32, (1, HW), 1)
        row = pos // W
        cpos = pos - row * W
        row_ok = {dy: (row < H - dy) if dy > 0 else (row >= -dy)
                  for dy in need_dy}
        col_ok = {dx: (cpos < W - dx) if dx > 0 else (cpos >= -dx)
                  for dx in need_dx}

        def tap(v, dy, dx):
            # "same" depthwise tap: lane roll + shared edge mask (1 AND + 1 sel)
            s = dy * W + dx
            if s == 0:
                return v
            sh = (-s) % HW if roll_up else s % HW
            t = pltpu.roll(v, sh, 1)
            m = None
            if dy != 0:
                m = row_ok[dy]
            if dx != 0:
                m = col_ok[dx] if m is None else (m & col_ok[dx])
            return jnp.where(m, t, 0.0)

        # single pass over a merged tap set, one accumulator
        def dw_merged(v, taps, wname, bname):
            base = COL_OFF[wname]
            acc = None
            for t_i, (dy, dx) in enumerate(taps):
                term = col(base + t_i) * tap(v, dy, dx)
                acc = term if acc is None else acc + term
            return acc + col(COL_OFF[bname])

        # single pass over the union of dilated taps, one accumulator per conv
        def dw_dilated(v):
            accs = [None] * len(DILATED_KERNELS)
            for dy, dx in DIL_UNION:
                tv = tap(v, dy, dx)
                for i, k in enumerate(DILATED_KERNELS):
                    taps_k = DIL_TAPS[k]
                    if (dy, dx) not in taps_k:
                        continue
                    term = col(COL_OFF[f"dil{i}_w"] + taps_k.index((dy, dx))) * tv
                    accs[i] = term if accs[i] is None else accs[i] + term
            total = None
            for i, _k in enumerate(DILATED_KERNELS):
                a = gelu(accs[i] + col(COL_OFF[f"dil{i}_b"]))
                total = a if total is None else total + a
            return total

        # pointwise C_IN -> HIDDEN (+GELU), per image; weight columns hoisted.
        # (Stays on the VPU on purpose: contraction depth 4-6 would leave the
        #  MXU <5% utilized and add XLU transposes.)
        def pconv_expand(v8, wname, bname):
            base = COL_OFF[wname]
            wc = [col(base + c, HIDDEN) for c in range(C_IN)]
            bc = col(COL_OFF[bname], HIDDEN)
            hs = []
            for i in range(FOLD):
                acc = wc[0] * v8[4 * i:4 * i + 1, :]
                for c in range(1, C_IN):
                    acc = acc + wc[c] * v8[4 * i + c:4 * i + c + 1, :]
                hs.append(gelu(acc + bc))
            return hs

        # pointwise HIDDEN -> C_IN, accumulated straight into folded (8, HW)
        def pconv_contract(h_pair, wname, bname):
            base = COL_OFF[wname]
            acc = None
            for i in range(FOLD):
                for c in range(HIDDEN):
                    term = col(base + i * HIDDEN + c) * h_pair[i][c:c + 1, :]
                    acc = term if acc is None else acc + term
            return acc + col(COL_OFF[bname])

        # pointwise C_IN -> C_IN on the folded (8, HW) activation
        def pconv_mix(v8, wname, bname):
            base = COL_OFF[wname]
            acc = None
            for i in range(FOLD):
                for c in range(C_IN):
                    term = col(base + i * C_IN + c) * v8[4 * i + c:4 * i + c + 1, :]
                    acc = term if acc is None else acc + term
            return acc + col(COL_OFF[bname])

        # pointwise HIDDEN -> C_OUT, per image; weight columns hoisted
        def pconv_out(h_pair, wname, bname):
            base = COL_OFF[wname]
            wc = [col(base + c, C_OUT) for c in range(HIDDEN)]
            bc = col(COL_OFF[bname], C_OUT)
            outs = []
            for h in h_pair:
                acc = wc[0] * h[0:1, :]
                for c in range(1, HIDDEN):
                    acc = acc + wc[c] * h[c:c + 1, :]
                outs.append(acc + bc)
            return outs

        x = x_ref[...]                               # (8, HW), 2 folded images

        # x = gelu(x + ffn1(x))
        h = pconv_expand(x, "ffn1_w1", "ffn1_b1")
        x = gelu(x + pconv_contract(h, "ffn1_w2", "ffn1_b2"))
        res = x

        # x = gelu(x + sum(perceptual convs))  (1x1 folded into 3x3 at pack time)
        x = gelu(x + dw_merged(x, PERC_TAPS, "percM_w", "percM_b"))

        # x = gelu(x + sum(k_conv convs))
        x = gelu(x + dw_merged(x, CONV_TAPS, "convM_w", "convM_b"))

        # x = gelu(x + pw(x))
        x = gelu(x + pconv_mix(x, "pw_w", "pw_b"))

        # x = gelu(x + sum(gelu(dilated conv(res))))
        x = gelu(x + dw_dilated(res))

        # x = ffn2(x)   (conv -> gelu -> conv, no trailing activation)
        y = pconv_out(pconv_expand(x, "ffn2_w1", "ffn2_b1"), "ffn2_w2", "ffn2_b2")
        o_ref[0] = y[0].astype(o_ref.dtype)
        o_ref[1] = y[1].astype(o_ref.dtype)

    return kernel


# ------------------------------- wrapper --------------------------------------
def skblock_forward(x, params):
    """x: (N, C_IN, H, W) NCHW (PyTorch layout). Returns (N, C_OUT, H, W)."""
    N, C, H, W = x.shape
    assert C == C_IN
    HW = H * W
    # Lane-dense layout: the flattened spatial axis sits on the lane dimension.
    assert HW % 128 == 0, "demo layout expects H*W to be a multiple of 128"

    # Pad the batch to an even count so two images fold onto the 8 sublanes.
    Np = N + (N % 2)
    if Np != N:
        x = jnp.concatenate([x, jnp.zeros((1, C, H, W), x.dtype)], axis=0)
    pairs = Np // 2

    # VMEM budget: in/out double buffers + weight slab + ~20 live (8, HW) f32
    # intermediates (x, res, taps, accumulators, masks, GELU temps).  Sized so
    # it fits v5e's 16 MiB scoped default and v7x's 64 MiB physical VMEM.
    # TODO(synk): for images where this trips, tile H with a 4-row halo
    # (max reach of the 5x5 dilation-2 conv) on a second parallel grid axis.
    per_step_bytes = (2 * 4 * HW * (FOLD * C_IN + FOLD * C_OUT)   # I/O buffers
                      + 2 * 8 * 128 * 4                           # weight slab
                      + 20 * 8 * HW * 4)                          # live temps
    assert per_step_bytes < 12 * 1024 * 1024, per_step_bytes

    x3 = x.reshape(pairs, FOLD * C_IN, HW)     # contiguous, free reshape
    wslab = pack_params(params)                # (8, 128): one vreg of weights

    # NOTE (v7x megacore): the batch-pair grid axis is "parallel"; use N >= 4
    # (>= 2 pairs) to feed both TensorCores.
    out3 = pl.pallas_call(
        make_kernel(H, W, _roll_shifts_up()),
        out_shape=jax.ShapeDtypeStruct((Np, C_OUT, HW), jnp.float32),
        grid=(pairs,),
        in_specs=[
            pl.BlockSpec((None, FOLD * C_IN, HW), lambda b: (b, 0, 0)),
            pl.BlockSpec((8, 128), lambda b: (0, 0)),
        ],
        out_specs=pl.BlockSpec((2, C_OUT, HW), lambda b: (b, 0, 0)),
        compiler_params=pltpu.CompilerParams(
            dimension_semantics=("parallel",),
            vmem_limit_bytes=32 * 1024 * 1024),
    )(x3, wslab)
    return out3.reshape(Np, C_OUT, H, W)[:N]


# --------------------------- pure-JAX reference --------------------------------
def reference_forward(x_nchw, params):
    x = jnp.transpose(x_nchw, (0, 2, 3, 1))   # NHWC

    def gelu(v):
        return jax.nn.gelu(v, approximate=False)   # erf GELU == torch default

    def pconv(v, w, b):
        return jnp.einsum("nhwc,cd->nhwd", v, w) + b.reshape(1, 1, 1, -1)

    def dwconv(v, w, b, k, dil, pad):
        f = w.reshape(k, k, 1, C_IN)
        out = lax.conv_general_dilated(
            v, f, window_strides=(1, 1), padding=[(pad, pad), (pad, pad)],
            rhs_dilation=(dil, dil),
            dimension_numbers=("NHWC", "HWIO", "NHWC"),
            feature_group_count=C_IN)
        return out + b.reshape(1, 1, 1, -1)

    h = gelu(pconv(x, params["ffn1_w1"], params["ffn1_b1"]))
    h = pconv(h, params["ffn1_w2"], params["ffn1_b2"])
    x = gelu(x + h)
    res = x
    x = gelu(x + sum(dwconv(x, params[f"perc{i}_w"], params[f"perc{i}_b"], k, 1, k // 2)
                     for i, k in enumerate(PERCEPTUALS)))
    x = gelu(x + sum(dwconv(x, params[f"conv{i}_w"], params[f"conv{i}_b"], k, 1, k // 2)
                     for i, k in enumerate(K_CONV)))
    x = gelu(x + pconv(x, params["pw_w"], params["pw_b"]))
    x = gelu(x + sum(gelu(dwconv(res, params[f"dil{i}_w"], params[f"dil{i}_b"],
                                 k, DILATION, DILATION * (k - 1) // 2))
                     for i, k in enumerate(DILATED_KERNELS)))
    x = gelu(pconv(x, params["ffn2_w1"], params["ffn2_b1"]))
    x = pconv(x, params["ffn2_w2"], params["ffn2_b2"])
    return jnp.transpose(x, (0, 3, 1, 2))     # back to NCHW


# --------------------------------- main ----------------------------------------
if __name__ == "__main__":
    key = jax.random.PRNGKey(0)
    kx, kp = jax.random.split(key)

    N, H, W = 2, 16, 16
    x = jax.random.normal(kx, (N, C_IN, H, W), jnp.float32)   # NCHW like PyTorch
    params = init_params(kp)

    out = skblock_forward(x, params)
    out = jax.block_until_ready(out)

    ref = jax.block_until_ready(reference_forward(x, params))
    max_err = float(jnp.max(jnp.abs(out - ref)))
    assert out.shape == (N, C_OUT, H, W), out.shape
    assert max_err < 1e-3, f"mismatch vs reference: {max_err}"

    print("KERNEL_OK")
</pallas_src>

<mosaic_0001>
module attributes {stable_mosaic.version = 11 : i64} {
  func.func @probe(%arg0: memref<8x256xf32, #tpu.memory_space<vmem>>, %arg1: memref<8x256xf32, #tpu.memory_space<vmem>>) attributes {dimension_semantics = [], scalar_prefetch = 0 : i64, scratch_operands = 0 : i64, tpu.core_type = #tpu.core_type<tc>} {
    %c0 = arith.constant 0 : index
    %c0_0 = arith.constant 0 : index
    %0 = vector.load %arg0[%c0, %c0_0] : memref<8x256xf32, #tpu.memory_space<vmem>>, vector<8x256xf32>
    %c1_i32 = arith.constant 1 : i32
    %1 = tpu.dynamic_rotate %0 by %c1_i32 dim 1 : vector<8x256xf32>, i32 -> vector<8x256xf32>
    %c0_1 = arith.constant 0 : index
    %c0_2 = arith.constant 0 : index
    %2 = vector.load %arg1[%c0_1, %c0_2] : memref<8x256xf32, #tpu.memory_space<vmem>>, vector<8x256xf32>
    tpu.vector_store %arg1[%c0_1, %c0_2], %1 {strides = array<i32>} : memref<8x256xf32, #tpu.memory_space<vmem>>, vector<8x256xf32>,
    return
  }
}

</mosaic_0001>

<llo_original>
// kernel: tpu_custom_call.1
$region0: #{tpu_custom_call.1}
  #allocation0 [shape = 'u32[]', space=smem, size = 0x4, offset = 0x4, fixed_abs, tag = 'smem constant byte address 0x4 - core index']
  #allocation1 [shape = 'u32[144,128]{1,0:T(1,128)}', space=vmem, size = 0x12000, scoped, tag = 'internal scratch']
  %s0 = inlined_call_operand.hbm [shape: f32[8,256], index: 0, kind: input, shape index: {}]
  %s1 = inlined_call_operand.hbm [shape: f32[8,256], index: 1, kind: output, shape index: {}]
  %s2 = sld [smem:[#allocation0]]
  $region18: #{tpu_custom_call.1} parent=0
    _
  %s4 = ssub.s32 1, %s2
  %s5 = scalar_select 0, %s4, %s2
  $region1: #{tpu_custom_call.1} parent=0
    #allocation2 [shape = 'u8[8192]{0}', space=vmem, size = 0x2000, scoped, tag = 'input window, operand 0, single buffered']
    #allocation3 [shape = 's32[1]{0}', space=sflag, size = 0x4, scoped, tag = 'scoped memory for tpu_custom_call.1']
    #allocation4 [shape = 's32[1]{0}', space=sflag, size = 0x4, scoped, tag = 'scoped memory for tpu_custom_call.1']
    #allocation5 [shape = 'u8[8192]{0}', space=vmem, size = 0x2000, scoped, tag = 'output window, operand 0, single buffered']
    %6 = vsyncpa [#allocation3], 0
    %7 = vsyncpa [#allocation4], 0
    // Predicated region
    $region2: #{tpu_custom_call.1} parent=1 // pred_check
      _
    $region3: #{tpu_custom_call.1} parent=1 // pred_check_branch
      %9 = sbr.rel (0) target = $region5
    $region4: #{tpu_custom_call.1} parent=1 // pred_region
      %s11 = ssub.s32 256, 256
      %12 = vsyncadd [#allocation3], %s11
      %s14 = sshll.u32 [#allocation2], 4
      %s15 = int_to_ptr.vmem [resolvable:$true] %s14
      %17 = dma.hbm_to_vmem [thread:$0]  %s0, 256, %s15, [#allocation3]
    $region5: #{tpu_custom_call.1} parent=1 // pred_fallthru
      _
    // Predicated region
    $region6: #{tpu_custom_call.1} parent=1 // pred_check
      _
    $region7: #{tpu_custom_call.1} parent=1 // pred_check_branch
      %19 = sbr.rel (0) target = $region9
    $region8: #{tpu_custom_call.1} parent=1 // pred_region
      %20 = dma.done [#allocation3], 256
    $region9: #{tpu_custom_call.1} parent=1 // pred_fallthru
      _
    %v21 = vld [vmem:[#allocation2] sm:$0xff]
    %v22 = vld [vmem:[#allocation2 + $0x8] sm:$0xff]
    %23 = vrot.lane.b32.xlu0 %v21, 1
    %v24 = vpop.permute.xlu0 %23
    %25 = vrot.lane.b32.xlu0 %v22, 1
    %v26 = vpop.permute.xlu0 %25
    %v27 = vlaneseq
    %v28 = vand.u32 %v27, 127
    %vm29 = vcmp.lt.s32.totalorder %v28, 1
    %v30 = vsel %vm29, %v24, %v26
    %v31 = vsel %vm29, %v26, %v24
    %32 = vst [vmem:[#allocation5] sm:$0xff] %v31
    %33 = vst [vmem:[#allocation5 + $0x8] sm:$0xff] %v30
    // Predicated region
    $region10: #{tpu_custom_call.1} parent=1 // pred_check
      _
    $region11: #{tpu_custom_call.1} parent=1 // pred_check_branch
      %35 = sbr.rel (0) target = $region13
    $region12: #{tpu_custom_call.1} parent=1 // pred_region
      %s37 = ssub.s32 256, 256
      %38 = vsyncadd [#allocation4], %s37
      %s40 = sshll.u32 [#allocation5], 4
      %s41 = int_to_ptr.vmem [resolvable:$true] %s40
      %43 = dma.vmem_to_hbm [thread:$0]  %s41, 256, %s1, [#allocation4]
    $region13: #{tpu_custom_call.1} parent=1 // pred_fallthru
      _
    // Predicated region
    $region14: #{tpu_custom_call.1} parent=1 // pred_check
      _
    $region15: #{tpu_custom_call.1} parent=1 // pred_check_branch
      %45 = sbr.rel (0) target = $region17
    $region16: #{tpu_custom_call.1} parent=1 // pred_region
      %46 = dma.done [#allocation4], 256
    $region17: #{tpu_custom_call.1} parent=1 // pred_fallthru
      _
    %47 = vsyncpa [#allocation3], 1
    %48 = vsyncpa [#allocation4], 1

</llo_original>
